<compile_context>
chip_gen: v6e
topology: v6e:2x2x1
jax: 0.10.0
libtpu: 0.0.40
codegen_flags: <defaults>
</compile_context>

<pallas_src>
import math
import numpy as np
import jax
import jax.numpy as jnp
from jax.experimental import pallas as pl
from jax.experimental.pallas import tpu as pltpu


def _token_embedding_kernel(x_ref, w_ref, o_ref):
    # x_ref: (Bt, L, c_in)  whole batch rows, full L (circular wrap stays in-block)
    # w_ref: (3, c_in, d_model)  tap k applies to x[b, (i + k - 1) mod L]
    # o_ref: (Bt, L, d_model)
    bt, L, c_in = x_ref.shape
    d_model = o_ref.shape[-1]

    x_mid = x_ref[...]
    # Circular taps, built in VMEM (no extra HBM traffic).  Static-shift roll
    # lowers to two static slices + a concatenate along L.
    x_prev = jnp.roll(x_mid, shift=1, axis=1)    # x[b, (i-1) mod L]
    x_next = jnp.roll(x_mid, shift=-1, axis=1)   # x[b, (i+1) mod L]

    m = bt * L
    acc = jnp.dot(x_prev.reshape(m, c_in), w_ref[0],
                  preferred_element_type=jnp.float32)
    acc = acc + jnp.dot(x_mid.reshape(m, c_in), w_ref[1],
                        preferred_element_type=jnp.float32)
    acc = acc + jnp.dot(x_next.reshape(m, c_in), w_ref[2],
                        preferred_element_type=jnp.float32)
    o_ref[...] = acc.reshape(bt, L, d_model).astype(o_ref.dtype)


def token_embedding(x, weight):
    """x: (B, L, c_in).  weight: (d_model, c_in, 3) (PyTorch Conv1d layout)."""
    B, L, c_in = x.shape
    d_model = weight.shape[0]

    # Per-tap weights: w3[k] = weight[:, :, k].T  ->  (3, c_in, d_model).
    w3 = jnp.transpose(weight, (2, 1, 0))

    # --- Tile selection -----------------------------------------------------
    # ~4 MiB of f32 output per grid step (amortizes per-step overhead while
    # keeping the double-buffered working set well inside v7x's 64 MiB
    # physical VMEM).  Tiles hold whole batch rows so the circular wrap along
    # L never crosses a block boundary.
    out_bytes_per_row = L * d_model * 4
    target_tile_bytes = 4 << 20
    bt = max(1, min(B, target_tile_bytes // max(1, out_bytes_per_row)))
    if B >= 2:
        # Keep grid >= 2 so both v7x TensorCores get work (no-op on v5e/v6e).
        bt = min(bt, (B + 1) // 2)
    grid_b = pl.cdiv(B, bt)

    out = pl.pallas_call(
        _token_embedding_kernel,
        out_shape=jax.ShapeDtypeStruct((B, L, d_model), x.dtype),
        grid_spec=pltpu.PrefetchScalarGridSpec(
            num_scalar_prefetch=0,
            grid=(grid_b,),
            in_specs=[
                pl.BlockSpec((bt, L, c_in), lambda b: (b, 0, 0)),
                pl.BlockSpec((3, c_in, d_model), lambda b: (0, 0, 0)),
            ],
            out_specs=pl.BlockSpec((bt, L, d_model), lambda b: (b, 0, 0)),
        ),
        compiler_params=pltpu.CompilerParams(
            dimension_semantics=("parallel",),
            # Explicit limit: raises v5e/v6e's scoped default for big tiles,
            # stays below v7x's 64 MiB physical VMEM per TensorCore.
            vmem_limit_bytes=48 * 1024 * 1024,
        ),
    )(x, w3)
    return out


def _reference(x, weight):
    """Pure-JAX reference of the circular Conv1d (for correctness check)."""
    B, L, c_in = x.shape
    xp = jnp.concatenate([x[:, -1:, :], x, x[:, :1, :]], axis=1)  # (B, L+2, c_in)
    w = jnp.transpose(weight, (2, 1, 0))  # (3, c_in, d_model)
    out = jnp.zeros((B, L, weight.shape[0]), jnp.float32)
    for k in range(3):
        out = out + jnp.einsum("blc,cd->bld", xp[:, k:k + L, :], w[k])
    return out


if __name__ == "__main__":
    B, L, c_in, d_model = 2, 8, 4, 32

    key = jax.random.PRNGKey(0)
    kx, kw = jax.random.split(key)

    x = jax.random.normal(kx, (B, L, c_in), dtype=jnp.float32)

    # kaiming_normal_(mode='fan_in', nonlinearity='leaky_relu'):
    #   fan_in = c_in * kernel_size, gain = sqrt(2/(1+0.01**2)), std = gain/sqrt(fan_in)
    fan_in = c_in * 3
    gain = math.sqrt(2.0 / (1.0 + 0.01 ** 2))
    std = gain / math.sqrt(fan_in)
    weight = std * jax.random.normal(kw, (d_model, c_in, 3), dtype=jnp.float32)

    out = token_embedding(x, weight)
    out = jax.block_until_ready(out)

    ref = _reference(x, weight)
    assert out.shape == (B, L, d_model)
    np.testing.assert_allclose(np.asarray(out), np.asarray(ref), rtol=1e-5, atol=1e-5)

    print("KERNEL_OK")
</pallas_src>

<mosaic_0001>
module attributes {stable_mosaic.version = 11 : i64} {
  func.func @_token_embedding_kernel(%arg0: i32, %arg1: memref<1x8x4xf32, #tpu.memory_space<vmem>>, %arg2: memref<3x4x32xf32, #tpu.memory_space<vmem>>, %arg3: memref<1x8x32xf32, #tpu.memory_space<vmem>>) attributes {dimension_semantics = [#tpu.dimension_semantics<parallel>], iteration_bounds = array<i64: 2>, scalar_prefetch = 0 : i64, scratch_operands = 0 : i64, tpu.core_type = #tpu.core_type<tc>, window_params = [{transform_indices = @transform_0, window_bounds = array<i64: 1, 8, 4>}, {pipeline_mode = #tpu.pipeline_mode<synchronous>, transform_indices = @transform_1, window_bounds = array<i64: 3, 4, 32>}, {transform_indices = @transform_2, window_bounds = array<i64: 1, 8, 32>}]} {
    %c0 = arith.constant 0 : index
    %c0_0 = arith.constant 0 : index
    %c0_1 = arith.constant 0 : index
    %0 = vector.load %arg1[%c0, %c0_0, %c0_1] : memref<1x8x4xf32, #tpu.memory_space<vmem>>, vector<1x8x4xf32>
    %1 = vector.extract_strided_slice %0 {offsets = [0, 7, 0], sizes = [1, 1, 4], strides = [1, 1, 1]} : vector<1x8x4xf32> to vector<1x1x4xf32>
    %2 = vector.extract_strided_slice %0 {offsets = [0, 0, 0], sizes = [1, 7, 4], strides = [1, 1, 1]} : vector<1x8x4xf32> to vector<1x7x4xf32>
    %3 = tpu.concatenate %1, %2 in 1 : vector<1x1x4xf32>, vector<1x7x4xf32> -> vector<1x8x4xf32>
    %4 = vector.extract_strided_slice %0 {offsets = [0, 1, 0], sizes = [1, 7, 4], strides = [1, 1, 1]} : vector<1x8x4xf32> to vector<1x7x4xf32>
    %5 = vector.extract_strided_slice %0 {offsets = [0, 0, 0], sizes = [1, 1, 4], strides = [1, 1, 1]} : vector<1x8x4xf32> to vector<1x1x4xf32>
    %6 = tpu.concatenate %4, %5 in 1 : vector<1x7x4xf32>, vector<1x1x4xf32> -> vector<1x8x4xf32>
    %7 = vector.shape_cast %3 : vector<1x8x4xf32> to vector<8x4xf32>
    %c0_2 = arith.constant 0 : index
    %c0_3 = arith.constant 0 : index
    %c0_4 = arith.constant 0 : index
    %8 = vector.load %arg2[%c0_2, %c0_3, %c0_4] : memref<3x4x32xf32, #tpu.memory_space<vmem>>, vector<1x4x32xf32>
    %9 = vector.shape_cast %8 : vector<1x4x32xf32> to vector<4x32xf32>
    %cst = arith.constant dense<0.000000e+00> : vector<8x32xf32>
    %10 = tpu.matmul %7, %9, %cst {dimension_numbers = #tpu.dot_dimension_numbers<[1], [0], [0], [1], [0, 0, 1, 1], [], []>} : vector<8x4xf32>, vector<4x32xf32>, vector<8x32xf32> -> vector<8x32xf32>
    %11 = vector.shape_cast %0 : vector<1x8x4xf32> to vector<8x4xf32>
    %c1 = arith.constant 1 : index
    %c0_5 = arith.constant 0 : index
    %c0_6 = arith.constant 0 : index
    %12 = vector.load %arg2[%c1, %c0_5, %c0_6] : memref<3x4x32xf32, #tpu.memory_space<vmem>>, vector<1x4x32xf32>
    %13 = vector.shape_cast %12 : vector<1x4x32xf32> to vector<4x32xf32>
    %cst_7 = arith.constant dense<0.000000e+00> : vector<8x32xf32>
    %14 = tpu.matmul %11, %13, %cst_7 {dimension_numbers = #tpu.dot_dimension_numbers<[1], [0], [0], [1], [0, 0, 1, 1], [], []>} : vector<8x4xf32>, vector<4x32xf32>, vector<8x32xf32> -> vector<8x32xf32>
    %15 = arith.addf %10, %14 : vector<8x32xf32>
    %16 = vector.shape_cast %6 : vector<1x8x4xf32> to vector<8x4xf32>
    %c2 = arith.constant 2 : index
    %c0_8 = arith.constant 0 : index
    %c0_9 = arith.constant 0 : index
    %17 = vector.load %arg2[%c2, %c0_8, %c0_9] : memref<3x4x32xf32, #tpu.memory_space<vmem>>, vector<1x4x32xf32>
    %18 = vector.shape_cast %17 : vector<1x4x32xf32> to vector<4x32xf32>
    %cst_10 = arith.constant dense<0.000000e+00> : vector<8x32xf32>
    %19 = tpu.matmul %16, %18, %cst_10 {dimension_numbers = #tpu.dot_dimension_numbers<[1], [0], [0], [1], [0, 0, 1, 1], [], []>} : vector<8x4xf32>, vector<4x32xf32>, vector<8x32xf32> -> vector<8x32xf32>
    %20 = arith.addf %15, %19 : vector<8x32xf32>
    %21 = vector.shape_cast %20 : vector<8x32xf32> to vector<1x8x32xf32>
    %c0_11 = arith.constant 0 : index
    %c0_12 = arith.constant 0 : index
    %c0_13 = arith.constant 0 : index
    %22 = vector.load %arg3[%c0_11, %c0_12, %c0_13] : memref<1x8x32xf32, #tpu.memory_space<vmem>>, vector<1x8x32xf32>
    tpu.vector_store %arg3[%c0_11, %c0_12, %c0_13], %21 {strides = array<i32>} : memref<1x8x32xf32, #tpu.memory_space<vmem>>, vector<1x8x32xf32>,
    return
  }
  func.func @transform_0(%arg0: i32) -> (i32, i32, i32) {
    %c0_i32 = arith.constant 0 : i32
    %c0_i32_0 = arith.constant 0 : i32
    %c0_i32_1 = arith.constant 0 : i32
    return %arg0, %c0_i32, %c0_i32_0 : i32, i32, i32
  }
  func.func @transform_1(%arg0: i32) -> (i32, i32, i32) {
    %c0_i32 = arith.constant 0 : i32
    %c0_i32_0 = arith.constant 0 : i32
    %c0_i32_1 = arith.constant 0 : i32
    %c0_i32_2 = arith.constant 0 : i32
    return %c0_i32, %c0_i32_0, %c0_i32_1 : i32, i32, i32
  }
  func.func @transform_2(%arg0: i32) -> (i32, i32, i32) {
    %c0_i32 = arith.constant 0 : i32
    %c0_i32_0 = arith.constant 0 : i32
    %c0_i32_1 = arith.constant 0 : i32
    return %arg0, %c0_i32, %c0_i32_0 : i32, i32, i32
  }
}

</mosaic_0001>

<llo_original>
// kernel: tpu_custom_call.1
$region0: #{tpu_custom_call.1}
  #allocation0 [shape = 'u32[]', space=smem, size = 0x4, offset = 0x4, fixed_abs, tag = 'smem constant byte address 0x4 - core index']
  #allocation1 [shape = 'u32[144,128]{1,0:T(1,128)}', space=vmem, size = 0x12000, scoped, tag = 'internal scratch']
  %s0 = inlined_call_operand.vmem [shape: f32[2,8,4], index: 0, kind: input, shape index: {}]
  %s1 = inlined_call_operand.vmem [shape: f32[3,4,32], index: 1, kind: input, shape index: {}]
  %s2 = inlined_call_operand.hbm [shape: f32[2,8,32], index: 2, kind: output, shape index: {}]
  %s3 = sld [smem:[#allocation0]]
  $region41: #{tpu_custom_call.1} parent=0
    _
  %s5 = ssub.s32 1, %s3
  %s6 = scalar_select 0, %s5, %s3
  $region1: #{tpu_custom_call.1} parent=0
    #allocation2 [shape = 'u8[8192]{0}', space=vmem, size = 0x2000, scoped, tag = 'output window, operand 0']
    #allocation3 [shape = 's32[2]{0}', space=sflag, size = 0x8, scoped, tag = 'scoped memory for tpu_custom_call.1']
    %7 = vsyncpa [#allocation3], 0
    %s8 = scalar_lea.sflag [#allocation3], 1
    %9 = vsyncpa %s8, 0
    loop: start=0, step=1, limit=4
    $region2: #{tpu_custom_call.1} parent=1 // loop_pre_header
      _
    $region3: #{tpu_custom_call.1} parent=1 // loop_header
      %s11 = sphi 0, %s15
      %p12 = scmp.ge.s32.totalorder %s11, 4
      %s21 = sphi 0, %s23
      %s24 = sphi 0, %s21
      %s25 = sphi 0, %s24
      %s41 = sphi 0, %s25
      %s45 = sphi 0, %s45
      %s47 = sphi 0, %s45
      %s48 = sphi 0, %s47
      %s62 = sphi 0, %s48
      %s68 = sphi 0, %s70
      %s71 = sphi 0, %s68
      %s72 = sphi 0, %s71
      %s88 = sphi 0, %s72
    $region4: #{tpu_custom_call.1} parent=1 // loop_header_branch
      %14 = sbr.rel (%p12) target = $region8
    $region5: #{tpu_custom_call.1} parent=1 // loop_body
      %s16 = ssub.s32 %s11, 1
      %s17 = ssub.s32 %s11, 2
      %s18 = sadd.s32 %s11, 1
      %s19 = ssub.s32 %s11, %s18
      %p20 = scmp.eq.s32.totalorder %s19, 0
      %s22 = sadd.s32 %s21, 1
      %s23 = scalar_select %p20, %s21, %s22
      %p26 = pneg %p20
      %p27 = scmp.eq.s32.totalorder %s11, 1
      %p28 = por %p26, %p27
      %p29 = scmp.ne.s32.totalorder %s21, %s24
      %p30 = scmp.eq.s32.totalorder %s11, 0
      %p31 = por %p29, %p30
      %p32 = scmp.ne.s32.totalorder %s21, %s24
      %p33 = scmp.eq.s32.totalorder %s16, 1
      %p34 = por %p32, %p33
      %p35 = scmp.ne.s32.totalorder %s24, %s25
      %p36 = scmp.eq.s32.totalorder %s16, 0
      %p37 = por %p35, %p36
      %p38 = scmp.ne.s32.totalorder %s24, %s25
      %p39 = scmp.eq.s32.totalorder %s17, 1
      %p40 = por %p38, %p39
      %p42 = scmp.ne.s32.totalorder %s25, %s41
      %p43 = scmp.eq.s32.totalorder %s17, 0
      %p44 = por %p42, %p43
      %s46 = sadd.s32 %s45, 1
      %p49 = scmp.eq.s32.totalorder %s11, 1
      %p50 = scmp.ne.s32.totalorder %s45, %s47
      %p51 = scmp.eq.s32.totalorder %s11, 0
      %p52 = por %p50, %p51
      %p53 = scmp.ne.s32.totalorder %s45, %s47
      %p54 = scmp.eq.s32.totalorder %s16, 1
      %p55 = por %p53, %p54
      %p56 = scmp.ne.s32.totalorder %s47, %s48
      %p57 = scmp.eq.s32.totalorder %s16, 0
      %p58 = por %p56, %p57
      %p59 = scmp.ne.s32.totalorder %s47, %s48
      %p60 = scmp.eq.s32.totalorder %s17, 1
      %p61 = por %p59, %p60
      %p63 = scmp.ne.s32.totalorder %s48, %s62
      %p64 = scmp.eq.s32.totalorder %s17, 0
      %p65 = por %p63, %p64
      %s66 = ssub.s32 %s11, %s18
      %p67 = scmp.eq.s32.totalorder %s66, 0
      %s69 = sadd.s32 %s68, 1
      %s70 = scalar_select %p67, %s68, %s69
      %p73 = pneg %p67
      %p74 = scmp.eq.s32.totalorder %s11, 1
      %p75 = por %p73, %p74
      %p76 = scmp.ne.s32.totalorder %s68, %s71
      %p77 = scmp.eq.s32.totalorder %s11, 0
      %p78 = por %p76, %p77
      %p79 = scmp.ne.s32.totalorder %s68, %s71
      %p80 = scmp.eq.s32.totalorder %s16, 1
      %p81 = por %p79, %p80
      %p82 = scmp.ne.s32.totalorder %s71, %s72
      %p83 = scmp.eq.s32.totalorder %s16, 0
      %p84 = por %p82, %p83
      %p85 = scmp.ne.s32.totalorder %s71, %s72
      %p86 = scmp.eq.s32.totalorder %s17, 1
      %p87 = por %p85, %p86
      %p89 = scmp.ne.s32.totalorder %s72, %s88
      %p90 = scmp.eq.s32.totalorder %s17, 0
      %p91 = por %p89, %p90
      %p92 = scmp.le.s32.totalorder 1, %s11
      %p93 = scmp.lt.s32.totalorder %s11, 3
      %p94 = pnand %p92, %p93
      %p95 = pneg %p94
      // Predicated region
      $region9: #{tpu_custom_call.1} parent=5 // pred_check
        _
      $region10: #{tpu_custom_call.1} parent=5 // pred_check_branch
        %97 = sbr.rel (%p94) target = $region12
      $region11: #{tpu_custom_call.1} parent=5 // pred_region
        %s98 = ssub.s32 %s11, 1
        // Predicated region
        $region13: #{tpu_custom_call.1} parent=11 // pred_check
          %p99 = pneg %p58
        $region14: #{tpu_custom_call.1} parent=11 // pred_check_branch
          %101 = sbr.rel (%p99) target = $region16
        $region15: #{tpu_custom_call.1} parent=11 // pred_region
          _
        $region16: #{tpu_custom_call.1} parent=11 // pred_fallthru
          _
      $region12: #{tpu_custom_call.1} parent=5 // pred_fallthru
        _
      %p102 = scmp.lt.s32.totalorder %s11, 2
      // Predicated region
      $region17: #{tpu_custom_call.1} parent=5 // pred_check
        %p103 = pneg %p102
      $region18: #{tpu_custom_call.1} parent=5 // pred_check_branch
        %105 = sbr.rel (%p103) target = $region20
      $region19: #{tpu_custom_call.1} parent=5 // pred_region
        // Predicated region
        $region21: #{tpu_custom_call.1} parent=19 // pred_check
          %p106 = pneg %p31
        $region22: #{tpu_custom_call.1} parent=19 // pred_check_branch
          %108 = sbr.rel (%p106) target = $region24
        $region23: #{tpu_custom_call.1} parent=19 // pred_region
          %p109 = scmp.lt.s32.totalorder %s11, 1
          %s110 = scalar_select %p109, %s11, 1
          %s111 = smul.addr %s110, 8
          %s112 = scalar_lea.vmem %s0, %s111
        $region24: #{tpu_custom_call.1} parent=19 // pred_fallthru
          _
      $region20: #{tpu_custom_call.1} parent=5 // pred_fallthru
        _
      %p113 = scmp.le.s32.totalorder 1, %s11
      %p114 = scmp.lt.s32.totalorder %s11, 3
      %p115 = pnand %p113, %p114
      %p116 = pneg %p115
      // Predicated region
      $region25: #{tpu_custom_call.1} parent=5 // pred_check
        _
      $region26: #{tpu_custom_call.1} parent=5 // pred_check_branch
        %118 = sbr.rel (%p115) target = $region28
      $region27: #{tpu_custom_call.1} parent=5 // pred_region
        %s119 = ssub.s32 %s11, 1
        %p120 = scmp.lt.s32.totalorder %s16, 1
        %s121 = scalar_select %p120, %s16, 1
        %s122 = smul.addr %s121, 8
        %s123 = scalar_lea.vmem %s0, %s122
        %p124 = pneg %p37
        %p125 = pneg %p34
        %p126 = pneg %p58
        %p127 = pneg %p55
        %p128 = pneg %p84
        %p129 = pneg %p81
        %s130 = sand.u32 %s71, 1
        %s131 = scalar_lea.sflag [#allocation3], %s130
        %s132 = sand.u32 %s71, 1
        %s133 = smul.addr %s132, 8
        %s134 = scalar_lea.vmem [#allocation2], %s133
        %p135 = scmp.lt.s32.totalorder %s16, 1
        %s136 = scalar_select %p135, %s16, 1
        %s137 = smul.addr %s136, 8
        %s138 = scalar_lea.vmem %s0, %s137
        %v139 = vld [vmem:[%s138] sm:$0xff]
        %v141 = vrot.slane %v139, 7
        %vm143 = vcmask 1040384
        %v144 = vsel %vm143, %v141, %v141
        %v145 = vrot.slane %v139, 1
        %vm147 = vcmask 1046528
        %v148 = vsel %vm147, %v145, %v145
        %v149 = vld [vmem:[%s1] sm:$0xf]
        %s150 = scalar_lea.vmem %s1, 4
        %v151 = vld [vmem:[%s150] sm:$0xf]
        %vm152 = vcmask 31744
        %v153 = vsel %vm152, %v139, 0
        %vm155 = vcmask 1043456
        %v157 = vsel %vm155, %v151, 0
        %159 = vmatprep.subr.mxu0 0.0
        %160 = vmatpush1.msra.mxu0 0.0
        %161 = vmatprep.subr.mxu0 0.0
        %162 = vmatpush1.msra.mxu0 0.0
        %163 = vmatprep.subr.mxu0 0.0
        %164 = vmatpush1.msra.mxu0 0.0
        %165 = vmatprep.subr.mxu0 0.0
        %166 = vmatpush1.msra.mxu0 0.0
        %167 = vmatprep.subr.mxu0 0.0
        %168 = vmatpush1.msra.mxu0 0.0
        %169 = vmatprep.subr.mxu0 0.0
        %170 = vmatpush1.msra.mxu0 0.0
        %171 = vmatprep.subr.mxu0 0.0
        %172 = vmatpush1.msra.mxu0 0.0
        %173 = vmatprep.subr.mxu0 0.0
        %174 = vmatpush1.msra.mxu0 0.0
        %175 = vmatprep.subr.mxu0 0.0
        %176 = vmatpush1.msra.mxu0 0.0
        %177 = vmatprep.subr.mxu0 0.0
        %178 = vmatpush1.msra.mxu0 0.0
        %179 = vmatprep.subr.mxu0 0.0
        %180 = vmatpush1.msra.mxu0 0.0
        %181 = vmatprep.subr.mxu0 0.0
        %182 = vmatpush1.msra.mxu0 0.0
        %183 = vmatprep.subr.mxu0 0.0
        %184 = vmatpush1.msra.mxu0 0.0
        %185 = vmatprep.subr.mxu0 0.0
        %186 = vmatpush1.msra.mxu0 0.0
        %187 = vmatprep.subr.mxu0 0.0
        %188 = vmatpush1.msra.mxu0 0.0
        %189 = vmatprep.subr.mxu0 0.0
        %190 = vmatpush1.msra.mxu0 %v157
        %191 = vmatprep.subr.mxu0 0.0
        %192 = vmatpush2.msra.mxu0 0.0
        %193 = vmatprep.subr.mxu0 0.0
        %194 = vmatpush2.msra.mxu0 0.0
        %195 = vmatprep.subr.mxu0 0.0
        %196 = vmatpush2.msra.mxu0 0.0
        %197 = vmatprep.subr.mxu0 0.0
        %198 = vmatpush2.msra.mxu0 0.0
        %199 = vmatprep.subr.mxu0 0.0
        %200 = vmatpush2.msra.mxu0 0.0
        %201 = vmatprep.subr.mxu0 0.0
        %202 = vmatpush2.msra.mxu0 0.0
        %203 = vmatprep.subr.mxu0 0.0
        %204 = vmatpush2.msra.mxu0 0.0
        %205 = vmatprep.subr.mxu0 0.0
        %206 = vmatpush2.msra.mxu0 0.0
        %207 = vmatprep.subr.mxu0 0.0
        %208 = vmatpush2.msra.mxu0 0.0
        %209 = vmatprep.subr.mxu0 0.0
        %210 = vmatpush2.msra.mxu0 0.0
        %211 = vmatprep.subr.mxu0 0.0
        %212 = vmatpush2.msra.mxu0 0.0
        %213 = vmatprep.subr.mxu0 0.0
        %214 = vmatpush2.msra.mxu0 0.0
        %215 = vmatprep.subr.mxu0 0.0
        %216 = vmatpush2.msra.mxu0 0.0
        %217 = vmatprep.subr.mxu0 0.0
        %218 = vmatpush2.msra.mxu0 0.0
        %219 = vmatprep.subr.mxu0 0.0
        %220 = vmatpush2.msra.mxu0 0.0
        %221 = vmatprep.subr.mxu0 0.0
        %222 = vmatpush2.msra.mxu0 0.0
        %223 = vmatprep.mubr.f32.mxu0 0.0
        %224 = vmatmul.mubr.f32.gmra.mxu0 %v153
        %v225 = vpop.f32.mrf.mxu0
        %v226 = vadd.f32 0.0, %v225
        %v227 = vpop.f32.mrf.mxu0
        %228 = vdwg.mxu0
        %v230 = vsel %vm152, %v144, 0
        %v233 = vsel %vm155, %v149, 0
        %235 = vmatprep.subr.mxu0 0.0
        %236 = vmatpush1.msra.mxu0 0.0
        %237 = vmatprep.subr.mxu0 0.0
        %238 = vmatpush1.msra.mxu0 0.0
        %239 = vmatprep.subr.mxu0 0.0
        %240 = vmatpush1.msra.mxu0 0.0
        %241 = vmatprep.subr.mxu0 0.0
        %242 = vmatpush1.msra.mxu0 0.0
        %243 = vmatprep.subr.mxu0 0.0
        %244 = vmatpush1.msra.mxu0 0.0
        %245 = vmatprep.subr.mxu0 0.0
        %246 = vmatpush1.msra.mxu0 0.0
        %247 = vmatprep.subr.mxu0 0.0
        %248 = vmatpush1.msra.mxu0 0.0
        %249 = vmatprep.subr.mxu0 0.0
        %250 = vmatpush1.msra.mxu0 0.0
        %251 = vmatprep.subr.mxu0 0.0
        %252 = vmatpush1.msra.mxu0 0.0
        %253 = vmatprep.subr.mxu0 0.0
        %254 = vmatpush1.msra.mxu0 0.0
        %255 = vmatprep.subr.mxu0 0.0
        %256 = vmatpush1.msra.mxu0 0.0
        %257 = vmatprep.subr.mxu0 0.0
        %258 = vmatpush1.msra.mxu0 0.0
        %259 = vmatprep.subr.mxu0 0.0
        %260 = vmatpush1.msra.mxu0 0.0
        %261 = vmatprep.subr.mxu0 0.0
        %262 = vmatpush1.msra.mxu0 0.0
        %263 = vmatprep.subr.mxu0 0.0
        %264 = vmatpush1.msra.mxu0 0.0
        %265 = vmatprep.subr.mxu0 0.0
        %266 = vmatpush1.msra.mxu0 %v233
        %267 = vmatprep.subr.mxu0 0.0
        %268 = vmatpush2.msra.mxu0 0.0
        %269 = vmatprep.subr.mxu0 0.0
        %270 = vmatpush2.msra.mxu0 0.0
        %271 = vmatprep.subr.mxu0 0.0
        %272 = vmatpush2.msra.mxu0 0.0
        %273 = vmatprep.subr.mxu0 0.0
        %274 = vmatpush2.msra.mxu0 0.0
        %275 = vmatprep.subr.mxu0 0.0
        %276 = vmatpush2.msra.mxu0 0.0
        %277 = vmatprep.subr.mxu0 0.0
        %278 = vmatpush2.msra.mxu0 0.0
        %279 = vmatprep.subr.mxu0 0.0
        %280 = vmatpush2.msra.mxu0 0.0
        %281 = vmatprep.subr.mxu0 0.0
        %282 = vmatpush2.msra.mxu0 0.0
        %283 = vmatprep.subr.mxu0 0.0
        %284 = vmatpush2.msra.mxu0 0.0
        %285 = vmatprep.subr.mxu0 0.0
        %286 = vmatpush2.msra.mxu0 0.0
        %287 = vmatprep.subr.mxu0 0.0
        %288 = vmatpush2.msra.mxu0 0.0
        %289 = vmatprep.subr.mxu0 0.0
        %290 = vmatpush2.msra.mxu0 0.0
        %291 = vmatprep.subr.mxu0 0.0
        %292 = vmatpush2.msra.mxu0 0.0
        %293 = vmatprep.subr.mxu0 0.0
        %294 = vmatpush2.msra.mxu0 0.0
        %295 = vmatprep.subr.mxu0 0.0
        %296 = vmatpush2.msra.mxu0 0.0
        %297 = vmatprep.subr.mxu0 0.0
        %298 = vmatpush2.msra.mxu0 0.0
        %299 = vmatprep.mubr.f32.mxu0 0.0
        %300 = vmatmul.mubr.f32.gmra.mxu0 %v230
        %v301 = vpop.f32.mrf.mxu0
        %v302 = vadd.f32 %v226, %v301
        %v303 = vpop.f32.mrf.mxu0
        %304 = vdwg.mxu0
        %s305 = scalar_lea.vmem %s1, 8
        %v306 = vld [vmem:[%s305] sm:$0xf]
        %v308 = vsel %vm152, %v148, 0
        %v311 = vsel %vm155, %v306, 0
        %313 = vmatprep.subr.mxu0 0.0
        %314 = vmatpush1.msra.mxu0 0.0
        %315 = vmatprep.subr.mxu0 0.0
        %316 = vmatpush1.msra.mxu0 0.0
        %317 = vmatprep.subr.mxu0 0.0
        %318 = vmatpush1.msra.mxu0 0.0
        %319 = vmatprep.subr.mxu0 0.0
        %320 = vmatpush1.msra.mxu0 0.0
        %321 = vmatprep.subr.mxu0 0.0
        %322 = vmatpush1.msra.mxu0 0.0
        %323 = vmatprep.subr.mxu0 0.0
        %324 = vmatpush1.msra.mxu0 0.0
        %325 = vmatprep.subr.mxu0 0.0
        %326 = vmatpush1.msra.mxu0 0.0
        %327 = vmatprep.subr.mxu0 0.0
        %328 = vmatpush1.msra.mxu0 0.0
        %329 = vmatprep.subr.mxu0 0.0
        %330 = vmatpush1.msra.mxu0 0.0
        %331 = vmatprep.subr.mxu0 0.0
        %332 = vmatpush1.msra.mxu0 0.0
        %333 = vmatprep.subr.mxu0 0.0
        %334 = vmatpush1.msra.mxu0 0.0
        %335 = vmatprep.subr.mxu0 0.0
        %336 = vmatpush1.msra.mxu0 0.0
        %337 = vmatprep.subr.mxu0 0.0
        %338 = vmatpush1.msra.mxu0 0.0
        %339 = vmatprep.subr.mxu0 0.0
        %340 = vmatpush1.msra.mxu0 0.0
        %341 = vmatprep.subr.mxu0 0.0
        %342 = vmatpush1.msra.mxu0 0.0
        %343 = vmatprep.subr.mxu0 0.0
        %344 = vmatpush1.msra.mxu0 %v311
        %345 = vmatprep.subr.mxu0 0.0
        %346 = vmatpush2.msra.mxu0 0.0
        %347 = vmatprep.subr.mxu0 0.0
        %348 = vmatpush2.msra.mxu0 0.0
        %349 = vmatprep.subr.mxu0 0.0
        %350 = vmatpush2.msra.mxu0 0.0
        %351 = vmatprep.subr.mxu0 0.0
        %352 = vmatpush2.msra.mxu0 0.0
        %353 = vmatprep.subr.mxu0 0.0
        %354 = vmatpush2.msra.mxu0 0.0
        %355 = vmatprep.subr.mxu0 0.0
        %356 = vmatpush2.msra.mxu0 0.0
        %357 = vmatprep.subr.mxu0 0.0
        %358 = vmatpush2.msra.mxu0 0.0
        %359 = vmatprep.subr.mxu0 0.0
        %360 = vmatpush2.msra.mxu0 0.0
        %361 = vmatprep.subr.mxu0 0.0
        %362 = vmatpush2.msra.mxu0 0.0
        %363 = vmatprep.subr.mxu0 0.0
        %364 = vmatpush2.msra.mxu0 0.0
        %365 = vmatprep.subr.mxu0 0.0
        %366 = vmatpush2.msra.mxu0 0.0
        %367 = vmatprep.subr.mxu0 0.0
        %368 = vmatpush2.msra.mxu0 0.0
        %369 = vmatprep.subr.mxu0 0.0
        %370 = vmatpush2.msra.mxu0 0.0
        %371 = vmatprep.subr.mxu0 0.0
        %372 = vmatpush2.msra.mxu0 0.0
        %373 = vmatprep.subr.mxu0 0.0
        %374 = vmatpush2.msra.mxu0 0.0
        %375 = vmatprep.subr.mxu0 0.0
        %376 = vmatpush2.msra.mxu0 0.0
        %377 = vmatprep.mubr.f32.mxu0 0.0
        %378 = vmatmul.mubr.f32.gmra.mxu0 %v308
        %v379 = vpop.f32.mrf.mxu0
        %v380 = vadd.f32 0.0, %v379
        %v381 = vpop.f32.mrf.mxu0
        %382 = vdwg.mxu0
        %v383 = vadd.f32 %v302, %v380
        %vm384 = vcmask 261120
        %385 = vst.msk [vmem:[%s134] sm:$0xff] %vm384, %v383
        %s386 = sand.u32 %s71, 1
        %s387 = scalar_lea.sflag [#allocation3], %s386
        %s388 = sand.u32 %s71, 1
        %s389 = smul.addr %s388, 8
        %s390 = scalar_lea.vmem [#allocation2], %s389
        // Predicated region
        $region29: #{tpu_custom_call.1} parent=27 // pred_check
          %p391 = pneg %p81
        $region30: #{tpu_custom_call.1} parent=27 // pred_check_branch
          %393 = sbr.rel (%p391) target = $region32
        $region31: #{tpu_custom_call.1} parent=27 // pred_region
          %s395 = ssub.s32 128, 128
          %396 = vsyncadd %s387, %s395
          %s397 = smul.addr %s16, 128
          %s398 = scalar_lea.hbm %s2, %s397
          %s400 = sshll.u32 %s390, 4
          %s401 = int_to_ptr.vmem [resolvable:$true] %s400
          %403 = dma.vmem_to_hbm [thread:$0]  %s401, 128, %s398, %s387
        $region32: #{tpu_custom_call.1} parent=27 // pred_fallthru
          _
      $region28: #{tpu_custom_call.1} parent=5 // pred_fallthru
        _
      %p404 = scmp.le.s32.totalorder 2, %s11
      // Predicated region
      $region33: #{tpu_custom_call.1} parent=5 // pred_check
        %p405 = pneg %p404
      $region34: #{tpu_custom_call.1} parent=5 // pred_check_branch
        %407 = sbr.rel (%p405) target = $region36
      $region35: #{tpu_custom_call.1} parent=5 // pred_region
        %s408 = ssub.s32 %s11, 2
        // Predicated region
        $region37: #{tpu_custom_call.1} parent=35 // pred_check
          %p409 = pneg %p87
        $region38: #{tpu_custom_call.1} parent=35 // pred_check_branch
          %411 = sbr.rel (%p409) target = $region40
        $region39: #{tpu_custom_call.1} parent=35 // pred_region
          %s412 = sand.u32 %s72, 1
          %s413 = scalar_lea.sflag [#allocation3], %s412
          %s414 = sand.u32 %s72, 1
          %s415 = smul.addr %s414, 8
          %s416 = scalar_lea.vmem [#allocation2], %s415
          %417 = dma.done %s413, 128
        $region40: #{tpu_custom_call.1} parent=35 // pred_fallthru
          _
      $region36: #{tpu_custom_call.1} parent=5 // pred_fallthru
        _
    $region6: #{tpu_custom_call.1} parent=1 // loop_footer
      %s15 = sadd.s32 1, %s11
    $region7: #{tpu_custom_call.1} parent=1 // loop_footer_branch
      %10 = sbr.rel target = $region3
    $region8: #{tpu_custom_call.1} parent=1 // loop_exit
      _
    %418 = vsyncpa [#allocation3], 1
    %s419 = scalar_lea.sflag [#allocation3], 1
    %420 = vsyncpa %s419, 1

</llo_original>
